<compile_context>
chip_gen: v7x
topology: tpu7x:2x2x1
jax: 0.10.0
libtpu: 0.0.40
codegen_flags: <defaults>
</compile_context>

<pallas_src>
import jax
import jax.numpy as jnp
from jax.experimental import pallas as pl
from jax.experimental.pallas import tpu as pltpu

IGNORE_INDEX = 255   # PyTorch ignore_index; carried over HBM as int8 sentinel -1
SMOOTH = 1e-5


def _make_kernel(cin, nclass, tr):
    nq = 2 + 3 * nclass  # rows: [ce_sum, ce_cnt, (inter_k, zsum_k, ysum_k) * nclass]

    def red8(plane):
        # (tr, 128) -> (8, 128): sum groups of 8 sublanes (vreg-wise VPU adds, no XLU).
        return jnp.sum(plane.reshape(tr // 8, 8, 128), axis=0)

    def kernel(w_ref, b_ref, x_ref, lbl_ref, acc_ref):
        # w_ref:   (cin, nclass)     f32  SMEM   (1x1 conv weight, ZRiR stand-in)
        # b_ref:   (nclass,)         f32  SMEM
        # x_ref:   (1, cin, tr, 128) f32  VMEM   (channel planes of one pixel tile)
        # lbl_ref: (1, tr, 128)      i8   VMEM   (255 -> -1)
        # acc_ref: (1, nq, 8, 128)   f32  VMEM   (output block, revisited over tile axis)
        @pl.when(pl.program_id(2) == 0)
        def _init():
            acc_ref[...] = jnp.zeros_like(acc_ref)

        lbl = lbl_ref[0].astype(jnp.int32)                     # (tr, 128)
        valid = (lbl >= 0).astype(jnp.float32)                 # ignore (-1) -> 0

        # --- 1x1 projection (VPU FMAs, scalar weights from SMEM) + running max ---
        # Channel planes are read straight from the resident input block (no xc list).
        logits = []
        m = None
        for k in range(nclass):
            lk = x_ref[0, 0].astype(jnp.float32) * w_ref[0, k]
            for c in range(1, cin):
                lk = lk + x_ref[0, c].astype(jnp.float32) * w_ref[c, k]
            lk = lk + b_ref[k]
            logits.append(lk)
            m = lk if m is None else jnp.maximum(m, lk)

        # --- fused exp / denominator / label-gather pass (logits die here) ---
        e = []
        s = None
        picked_z = None
        for k in range(nclass):
            zk = logits[k] - m
            ek = jnp.exp(zk)
            e.append(ek)
            s = ek if s is None else s + ek
            pk = jnp.where(lbl == k, zk, 0.0)
            picked_z = pk if picked_z is None else picked_z + pk

        # Softmax denominator: approx EUP reciprocal + one Newton step (~f32 accurate).
        r = pl.reciprocal(s, approx=True)
        inv_s = r * (2.0 - s * r)
        log_s = jnp.log(s)

        # CrossEntropy(ignore_index=255): -(log_softmax[label]) on valid pixels.
        ce_plane = (log_s - picked_z) * valid
        acc_ref[0, 0] += red8(ce_plane)                        # CE numerator partial
        acc_ref[0, 1] += red8(valid)                           # CE valid-pixel count

        # Dice terms per class.
        for k in range(nclass):
            p = e[k] * inv_s                                   # softmax prob, class k
            is_k = (lbl == k).astype(jnp.float32)              # one-hot plane (255 -> 0)
            acc_ref[0, 2 + 3 * k] += red8(p * is_k)            # intersect_k
            acc_ref[0, 3 + 3 * k] += red8(p * p)               # z_sum_k
            acc_ref[0, 4 + 3 * k] += red8(is_k)                # y_sum_k (onehot^2==onehot)

    return kernel, nq


def _choose_tr(r_rows, cin, nclass):
    """Largest TR (multiple of 32 for int8 labels) fitting a conservative VMEM budget,
    preferring >= 4 tiles per image for pipelining."""
    budget = 12 << 20  # conservative vs. v5e's 16 MiB scoped default
    divisors = [c for c in (2048, 1024, 512, 256, 128, 64, 32) if r_rows % c == 0]
    if not divisors:
        return None

    def est_bytes(c):
        live = (2 * nclass + 6) * c * 128 * 4                  # f32 temporaries
        dma = 2 * (cin * c * 128 * 4 + c * 128)                # dbl-buffered x(f32) + lbl(i8)
        acc = (2 + 3 * nclass) * 8 * 128 * 4
        return live + dma + acc

    fitting = [c for c in divisors if est_bytes(c) <= budget] or divisors[-1:]
    piped = [c for c in fitting if r_rows // c >= 4]
    return piped[0] if piped else fitting[0]


@jax.jit
def loss_forward(x_nchw, label, w, b):
    """x_nchw: (B, Cin, H, W) float, label: (B, H, W) int (int8/uint8 preferred,
    ignore_index=255), w: (Cin, NC), b: (NC,)
    -> scalar f32 loss = DiceLoss(NC) + CrossEntropyLoss(ignore_index=255)."""
    B, Cin, H, W = x_nchw.shape
    NC = w.shape[1]
    HW = H * W
    assert HW % (32 * 128) == 0, "H*W must be a multiple of 4096 (int8 label tiling)"
    # TODO(synk): spatial sizes with H*W % 4096 != 0 would need a masked tail tile.
    R = HW // 128
    TR = _choose_tr(R, Cin, NC)
    assert TR is not None

    # NCHW is already channel-plane contiguous: these reshapes are free (no transpose pass).
    x_r = x_nchw.reshape(B, Cin, R, 128)                       # keep producer dtype (f32)
    # Labels over HBM as int8 (255 -> -1). No-op if the producer already feeds int8/uint8.
    lbl_r = label.reshape(B, R, 128).astype(jnp.int8)
    w32 = w.astype(jnp.float32)
    b32 = b.reshape(NC).astype(jnp.float32)

    kernel, NQ = _make_kernel(Cin, NC, TR)

    tiles = R // TR
    # Second "parallel" axis so both v7x TensorCores get work when B is 1/odd.
    nsplit = 2 if (B % 2 == 1 and tiles % 2 == 0) else 1
    tps = tiles // nsplit                                      # tiles per split

    grid_spec = pltpu.PrefetchScalarGridSpec(
        num_scalar_prefetch=0,
        grid=(B, nsplit, tps),
        in_specs=[
            pl.BlockSpec(memory_space=pltpu.MemorySpace.SMEM),               # w (scalars)
            pl.BlockSpec(memory_space=pltpu.MemorySpace.SMEM),               # b (scalars)
            pl.BlockSpec((1, Cin, TR, 128),
                         lambda bi, si, ti: (bi, 0, si * tps + ti, 0)),      # x planes
            pl.BlockSpec((1, TR, 128),
                         lambda bi, si, ti: (bi, si * tps + ti, 0)),         # labels
        ],
        out_specs=pl.BlockSpec((1, NQ, 8, 128),
                               lambda bi, si, ti: (bi * nsplit + si, 0, 0, 0)),
    )

    N = B * HW
    cost = pl.CostEstimate(
        flops=N * (2 * Cin * NC + 9 * NC + 8),
        transcendentals=N * (NC + 2),
        bytes_accessed=int(x_r.size) * x_r.dtype.itemsize + int(lbl_r.size)
                       + B * nsplit * NQ * 8 * 128 * 4,
    )

    acc = pl.pallas_call(
        kernel,
        grid_spec=grid_spec,
        out_shape=jax.ShapeDtypeStruct((B * nsplit, NQ, 8, 128), jnp.float32),
        compiler_params=pltpu.CompilerParams(
            dimension_semantics=("parallel", "parallel", "arbitrary")),
        cost_estimate=cost,
    )(w32, b32, x_r, lbl_r)

    # --- trivial scalar finalize (3*NC + 2 numbers) in the jitted wrapper ---
    sums = jnp.sum(acc, axis=(0, 2, 3))                        # (NQ,)
    # Note: guard yields a finite loss when every pixel is ignore_index (PyTorch -> NaN).
    ce = sums[0] / jnp.maximum(sums[1], 1.0)
    inter, zsum, ysum = sums[2::3], sums[3::3], sums[4::3]
    dice = jnp.sum(1.0 - (2.0 * inter + SMOOTH) / (zsum + ysum + SMOOTH)) / NC
    return dice + ce


if __name__ == "__main__":
    # Small shapes consistent with the module: in_chans=3, nclass=2.
    # H*W must be a multiple of 4096 for the int8-label tiling -> 64x64.
    B, Cin, H, W = 2, 3, 64, 64
    NCLASS = 2

    key = jax.random.PRNGKey(0)
    kx, kl, kw, kb, ki = jax.random.split(key, 5)

    x = jax.random.normal(kx, (B, Cin, H, W), dtype=jnp.float32)
    label = jax.random.randint(kl, (B, H, W), 0, NCLASS, dtype=jnp.int32)
    # sprinkle a few ignore_index pixels to exercise CE masking
    ignore_mask = jax.random.bernoulli(ki, 0.05, (B, H, W))
    label = jnp.where(ignore_mask, jnp.int32(IGNORE_INDEX), label)

    # deterministic stand-in "model" parameters (1x1 conv: Cin -> nclass)
    w = jax.random.normal(kw, (Cin, NCLASS), dtype=jnp.float32) * 0.5
    b = jax.random.normal(kb, (NCLASS,), dtype=jnp.float32) * 0.1

    # Labels are fed as int8, as a segmentation dataloader would supply them (255 -> -1).
    label_i8 = label.astype(jnp.int8)

    out = loss_forward(x, label_i8, w, b)
    jax.block_until_ready(out)

    # --- pure-JAX f32 reference ---
    logits = jnp.einsum('bchw,ck->bkhw', x, w) + b[None, :, None, None]
    lsm = jax.nn.log_softmax(logits, axis=1)
    probs = jax.nn.softmax(logits, axis=1)
    onehot = jax.nn.one_hot(label, NCLASS, axis=1, dtype=jnp.float32)   # 255 -> all-zero
    valid = (label != IGNORE_INDEX).astype(jnp.float32)
    ce_ref = jnp.sum(-jnp.sum(lsm * onehot, axis=1) * valid) / jnp.sum(valid)
    inter = jnp.sum(probs * onehot, axis=(0, 2, 3))
    zsum = jnp.sum(probs * probs, axis=(0, 2, 3))
    ysum = jnp.sum(onehot, axis=(0, 2, 3))
    dice_ref = jnp.sum(1.0 - (2.0 * inter + SMOOTH) / (zsum + ysum + SMOOTH)) / NCLASS
    ref = ce_ref + dice_ref

    assert jnp.allclose(out, ref, rtol=1e-4, atol=1e-4), (out, ref)
    print("KERNEL_OK")
</pallas_src>

<mosaic_0001>
module attributes {stable_mosaic.version = 11 : i64} {
  func.func @kernel(%arg0: i32, %arg1: i32, %arg2: i32, %arg3: memref<3x2xf32, #tpu.memory_space<smem>>, %arg4: memref<2xf32, #tpu.memory_space<smem>>, %arg5: memref<1x3x32x128xf32, #tpu.memory_space<vmem>>, %arg6: memref<1x32x128xi8, #tpu.memory_space<vmem>>, %arg7: memref<1x8x8x128xf32, #tpu.memory_space<vmem>>) attributes {dimension_semantics = [#tpu.dimension_semantics<parallel>, #tpu.dimension_semantics<parallel>, #tpu.dimension_semantics<arbitrary>], iteration_bounds = array<i64: 2, 1, 1>, scalar_prefetch = 0 : i64, scratch_operands = 0 : i64, tpu.core_type = #tpu.core_type<tc>, window_params = [{transform_indices = @transform_0, window_bounds = array<i64: 3, 2>}, {transform_indices = @transform_1, window_bounds = array<i64: 2>}, {transform_indices = @transform_2, window_bounds = array<i64: 1, 3, 32, 128>}, {transform_indices = @transform_3, window_bounds = array<i64: 1, 32, 128>}, {transform_indices = @transform_4, window_bounds = array<i64: 1, 8, 8, 128>}]} {
    %c0_i32 = arith.constant 0 : i32
    %0 = arith.cmpi eq, %arg2, %c0_i32 : i32
    %1 = arith.extui %0 : i1 to i32
    %c0_i32_0 = arith.constant 0 : i32
    %2 = arith.cmpi ne, %1, %c0_i32_0 : i32
    scf.if %2 {
      %cst_112 = arith.constant 0.000000e+00 : f32
      %151 = vector.broadcast %cst_112 : f32 to vector<1x8x8x128xf32>
      %c0_113 = arith.constant 0 : index
      %c0_114 = arith.constant 0 : index
      %c0_115 = arith.constant 0 : index
      %c0_116 = arith.constant 0 : index
      %152 = vector.load %arg7[%c0_113, %c0_114, %c0_115, %c0_116] : memref<1x8x8x128xf32, #tpu.memory_space<vmem>>, vector<1x8x8x128xf32>
      tpu.vector_store %arg7[%c0_113, %c0_114, %c0_115, %c0_116], %151 {strides = array<i32>} : memref<1x8x8x128xf32, #tpu.memory_space<vmem>>, vector<1x8x8x128xf32>,
    } else {
    }
    %c0 = arith.constant 0 : index
    %c0_1 = arith.constant 0 : index
    %c0_2 = arith.constant 0 : index
    %3 = vector.load %arg6[%c0, %c0_1, %c0_2] : memref<1x32x128xi8, #tpu.memory_space<vmem>>, vector<1x32x128xi8>
    %4 = vector.shape_cast %3 : vector<1x32x128xi8> to vector<32x128xi8>
    %5 = arith.extsi %4 : vector<32x128xi8> to vector<32x128xi32>
    %c0_i32_3 = arith.constant 0 : i32
    %6 = vector.broadcast %c0_i32_3 : i32 to vector<32x128xi32>
    %7 = arith.cmpi sge, %5, %6 : vector<32x128xi32>
    %8 = arith.extui %7 : vector<32x128xi1> to vector<32x128xi32>
    %9 = arith.sitofp %8 : vector<32x128xi32> to vector<32x128xf32>
    %c0_4 = arith.constant 0 : index
    %c0_5 = arith.constant 0 : index
    %c0_6 = arith.constant 0 : index
    %c0_7 = arith.constant 0 : index
    %10 = vector.load %arg5[%c0_4, %c0_5, %c0_6, %c0_7] : memref<1x3x32x128xf32, #tpu.memory_space<vmem>>, vector<1x1x32x128xf32>
    %11 = vector.shape_cast %10 : vector<1x1x32x128xf32> to vector<32x128xf32>
    %c0_8 = arith.constant 0 : index
    %c0_9 = arith.constant 0 : index
    %12 = memref.load %arg3[%c0_8, %c0_9] : memref<3x2xf32, #tpu.memory_space<smem>>
    %13 = vector.broadcast %12 : f32 to vector<32x128xf32>
    %14 = arith.mulf %11, %13 : vector<32x128xf32>
    %c0_10 = arith.constant 0 : index
    %c1 = arith.constant 1 : index
    %c0_11 = arith.constant 0 : index
    %c0_12 = arith.constant 0 : index
    %15 = vector.load %arg5[%c0_10, %c1, %c0_11, %c0_12] : memref<1x3x32x128xf32, #tpu.memory_space<vmem>>, vector<1x1x32x128xf32>
    %16 = vector.shape_cast %15 : vector<1x1x32x128xf32> to vector<32x128xf32>
    %c1_13 = arith.constant 1 : index
    %c0_14 = arith.constant 0 : index
    %17 = memref.load %arg3[%c1_13, %c0_14] : memref<3x2xf32, #tpu.memory_space<smem>>
    %18 = vector.broadcast %17 : f32 to vector<32x128xf32>
    %19 = arith.mulf %16, %18 : vector<32x128xf32>
    %20 = arith.addf %14, %19 : vector<32x128xf32>
    %c0_15 = arith.constant 0 : index
    %c2 = arith.constant 2 : index
    %c0_16 = arith.constant 0 : index
    %c0_17 = arith.constant 0 : index
    %21 = vector.load %arg5[%c0_15, %c2, %c0_16, %c0_17] : memref<1x3x32x128xf32, #tpu.memory_space<vmem>>, vector<1x1x32x128xf32>
    %22 = vector.shape_cast %21 : vector<1x1x32x128xf32> to vector<32x128xf32>
    %c2_18 = arith.constant 2 : index
    %c0_19 = arith.constant 0 : index
    %23 = memref.load %arg3[%c2_18, %c0_19] : memref<3x2xf32, #tpu.memory_space<smem>>
    %24 = vector.broadcast %23 : f32 to vector<32x128xf32>
    %25 = arith.mulf %22, %24 : vector<32x128xf32>
    %26 = arith.addf %20, %25 : vector<32x128xf32>
    %c0_20 = arith.constant 0 : index
    %27 = memref.load %arg4[%c0_20] : memref<2xf32, #tpu.memory_space<smem>>
    %28 = vector.broadcast %27 : f32 to vector<32x128xf32>
    %29 = arith.addf %26, %28 : vector<32x128xf32>
    %c0_21 = arith.constant 0 : index
    %c0_22 = arith.constant 0 : index
    %c0_23 = arith.constant 0 : index
    %c0_24 = arith.constant 0 : index
    %30 = vector.load %arg5[%c0_21, %c0_22, %c0_23, %c0_24] : memref<1x3x32x128xf32, #tpu.memory_space<vmem>>, vector<1x1x32x128xf32>
    %31 = vector.shape_cast %30 : vector<1x1x32x128xf32> to vector<32x128xf32>
    %c0_25 = arith.constant 0 : index
    %c1_26 = arith.constant 1 : index
    %32 = memref.load %arg3[%c0_25, %c1_26] : memref<3x2xf32, #tpu.memory_space<smem>>
    %33 = vector.broadcast %32 : f32 to vector<32x128xf32>
    %34 = arith.mulf %31, %33 : vector<32x128xf32>
    %c0_27 = arith.constant 0 : index
    %c1_28 = arith.constant 1 : index
    %c0_29 = arith.constant 0 : index
    %c0_30 = arith.constant 0 : index
    %35 = vector.load %arg5[%c0_27, %c1_28, %c0_29, %c0_30] : memref<1x3x32x128xf32, #tpu.memory_space<vmem>>, vector<1x1x32x128xf32>
    %36 = vector.shape_cast %35 : vector<1x1x32x128xf32> to vector<32x128xf32>
    %c1_31 = arith.constant 1 : index
    %c1_32 = arith.constant 1 : index
    %37 = memref.load %arg3[%c1_31, %c1_32] : memref<3x2xf32, #tpu.memory_space<smem>>
    %38 = vector.broadcast %37 : f32 to vector<32x128xf32>
    %39 = arith.mulf %36, %38 : vector<32x128xf32>
    %40 = arith.addf %34, %39 : vector<32x128xf32>
    %c0_33 = arith.constant 0 : index
    %c2_34 = arith.constant 2 : index
    %c0_35 = arith.constant 0 : index
    %c0_36 = arith.constant 0 : index
    %41 = vector.load %arg5[%c0_33, %c2_34, %c0_35, %c0_36] : memref<1x3x32x128xf32, #tpu.memory_space<vmem>>, vector<1x1x32x128xf32>
    %42 = vector.shape_cast %41 : vector<1x1x32x128xf32> to vector<32x128xf32>
    %c2_37 = arith.constant 2 : index
    %c1_38 = arith.constant 1 : index
    %43 = memref.load %arg3[%c2_37, %c1_38] : memref<3x2xf32, #tpu.memory_space<smem>>
    %44 = vector.broadcast %43 : f32 to vector<32x128xf32>
    %45 = arith.mulf %42, %44 : vector<32x128xf32>
    %46 = arith.addf %40, %45 : vector<32x128xf32>
    %c1_39 = arith.constant 1 : index
    %47 = memref.load %arg4[%c1_39] : memref<2xf32, #tpu.memory_space<smem>>
    %48 = vector.broadcast %47 : f32 to vector<32x128xf32>
    %49 = arith.addf %46, %48 : vector<32x128xf32>
    %50 = arith.maximumf %29, %49 : vector<32x128xf32>
    %51 = arith.subf %29, %50 : vector<32x128xf32>
    %52 = math.exp %51 : vector<32x128xf32>
    %c0_i32_40 = arith.constant 0 : i32
    %53 = vector.broadcast %c0_i32_40 : i32 to vector<32x128xi32>
    %54 = arith.cmpi eq, %5, %53 : vector<32x128xi32>
    %cst = arith.constant 0.000000e+00 : f32
    %55 = vector.broadcast %cst : f32 to vector<32x128xf32>
    %56 = arith.select %54, %51, %55 : vector<32x128xi1>, vector<32x128xf32>
    %57 = arith.subf %49, %50 : vector<32x128xf32>
    %58 = math.exp %57 : vector<32x128xf32>
    %59 = arith.addf %52, %58 : vector<32x128xf32>
    %c1_i32 = arith.constant 1 : i32
    %60 = vector.broadcast %c1_i32 : i32 to vector<32x128xi32>
    %61 = arith.cmpi eq, %5, %60 : vector<32x128xi32>
    %cst_41 = arith.constant 0.000000e+00 : f32
    %62 = vector.broadcast %cst_41 : f32 to vector<32x128xf32>
    %63 = arith.select %61, %57, %62 : vector<32x128xi1>, vector<32x128xf32>
    %64 = arith.addf %56, %63 : vector<32x128xf32>
    %65 = tpu.reciprocal %59 {approx = true} : vector<32x128xf32> -> vector<32x128xf32>
    %66 = arith.mulf %59, %65 : vector<32x128xf32>
    %cst_42 = arith.constant 2.000000e+00 : f32
    %67 = vector.broadcast %cst_42 : f32 to vector<32x128xf32>
    %68 = arith.subf %67, %66 : vector<32x128xf32>
    %69 = arith.mulf %65, %68 : vector<32x128xf32>
    %70 = math.log %59 : vector<32x128xf32>
    %71 = arith.subf %70, %64 : vector<32x128xf32>
    %72 = arith.mulf %71, %9 : vector<32x128xf32>
    %c0_43 = arith.constant 0 : index
    %c0_44 = arith.constant 0 : index
    %c0_45 = arith.constant 0 : index
    %c0_46 = arith.constant 0 : index
    %73 = vector.load %arg7[%c0_43, %c0_44, %c0_45, %c0_46] : memref<1x8x8x128xf32, #tpu.memory_space<vmem>>, vector<1x1x8x128xf32>
    %74 = vector.shape_cast %73 : vector<1x1x8x128xf32> to vector<8x128xf32>
    %75 = vector.shape_cast %72 : vector<32x128xf32> to vector<4x8x128xf32>
    %cst_47 = arith.constant dense<0.000000e+00> : vector<8x128xf32>
    %76 = vector.multi_reduction <add>, %75, %cst_47 [0] : vector<4x8x128xf32> to vector<8x128xf32>
    %77 = arith.addf %74, %76 : vector<8x128xf32>
    %c0_48 = arith.constant 0 : index
    %c0_49 = arith.constant 0 : index
    %c0_50 = arith.constant 0 : index
    %c0_51 = arith.constant 0 : index
    %78 = vector.load %arg7[%c0_48, %c0_49, %c0_50, %c0_51] : memref<1x8x8x128xf32, #tpu.memory_space<vmem>>, vector<1x1x8x128xf32>
    %79 = vector.shape_cast %78 : vector<1x1x8x128xf32> to vector<8x128xf32>
    %80 = vector.shape_cast %77 : vector<8x128xf32> to vector<1x1x8x128xf32>
    tpu.vector_store %arg7[%c0_48, %c0_49, %c0_50, %c0_51], %80 {strides = array<i32>} : memref<1x8x8x128xf32, #tpu.memory_space<vmem>>, vector<1x1x8x128xf32>,
    %c0_52 = arith.constant 0 : index
    %c1_53 = arith.constant 1 : index
    %c0_54 = arith.constant 0 : index
    %c0_55 = arith.constant 0 : index
    %81 = vector.load %arg7[%c0_52, %c1_53, %c0_54, %c0_55] : memref<1x8x8x128xf32, #tpu.memory_space<vmem>>, vector<1x1x8x128xf32>
    %82 = vector.shape_cast %81 : vector<1x1x8x128xf32> to vector<8x128xf32>
    %83 = vector.shape_cast %9 : vector<32x128xf32> to vector<4x8x128xf32>
    %cst_56 = arith.constant dense<0.000000e+00> : vector<8x128xf32>
    %84 = vector.multi_reduction <add>, %83, %cst_56 [0] : vector<4x8x128xf32> to vector<8x128xf32>
    %85 = arith.addf %82, %84 : vector<8x128xf32>
    %c0_57 = arith.constant 0 : index
    %c1_58 = arith.constant 1 : index
    %c0_59 = arith.constant 0 : index
    %c0_60 = arith.constant 0 : index
    %86 = vector.load %arg7[%c0_57, %c1_58, %c0_59, %c0_60] : memref<1x8x8x128xf32, #tpu.memory_space<vmem>>, vector<1x1x8x128xf32>
    %87 = vector.shape_cast %86 : vector<1x1x8x128xf32> to vector<8x128xf32>
    %88 = vector.shape_cast %85 : vector<8x128xf32> to vector<1x1x8x128xf32>
    tpu.vector_store %arg7[%c0_57, %c1_58, %c0_59, %c0_60], %88 {strides = array<i32>} : memref<1x8x8x128xf32, #tpu.memory_space<vmem>>, vector<1x1x8x128xf32>,
    %89 = arith.mulf %52, %69 : vector<32x128xf32>
    %c0_i32_61 = arith.constant 0 : i32
    %90 = vector.broadcast %c0_i32_61 : i32 to vector<32x128xi32>
    %91 = arith.cmpi eq, %5, %90 : vector<32x128xi32>
    %92 = arith.extui %91 : vector<32x128xi1> to vector<32x128xi32>
    %93 = arith.sitofp %92 : vector<32x128xi32> to vector<32x128xf32>
    %c0_62 = arith.constant 0 : index
    %c2_63 = arith.constant 2 : index
    %c0_64 = arith.constant 0 : index
    %c0_65 = arith.constant 0 : index
    %94 = vector.load %arg7[%c0_62, %c2_63, %c0_64, %c0_65] : memref<1x8x8x128xf32, #tpu.memory_space<vmem>>, vector<1x1x8x128xf32>
    %95 = vector.shape_cast %94 : vector<1x1x8x128xf32> to vector<8x128xf32>
    %96 = arith.mulf %89, %93 : vector<32x128xf32>
    %97 = vector.shape_cast %96 : vector<32x128xf32> to vector<4x8x128xf32>
    %cst_66 = arith.constant dense<0.000000e+00> : vector<8x128xf32>
    %98 = vector.multi_reduction <add>, %97, %cst_66 [0] : vector<4x8x128xf32> to vector<8x128xf32>
    %99 = arith.addf %95, %98 : vector<8x128xf32>
    %c0_67 = arith.constant 0 : index
    %c2_68 = arith.constant 2 : index
    %c0_69 = arith.constant 0 : index
    %c0_70 = arith.constant 0 : index
    %100 = vector.load %arg7[%c0_67, %c2_68, %c0_69, %c0_70] : memref<1x8x8x128xf32, #tpu.memory_space<vmem>>, vector<1x1x8x128xf32>
    %101 = vector.shape_cast %100 : vector<1x1x8x128xf32> to vector<8x128xf32>
    %102 = vector.shape_cast %99 : vector<8x128xf32> to vector<1x1x8x128xf32>
    tpu.vector_store %arg7[%c0_67, %c2_68, %c0_69, %c0_70], %102 {strides = array<i32>} : memref<1x8x8x128xf32, #tpu.memory_space<vmem>>, vector<1x1x8x128xf32>,
    %c0_71 = arith.constant 0 : index
    %c3 = arith.constant 3 : index
    %c0_72 = arith.constant 0 : index
    %c0_73 = arith.constant 0 : index
    %103 = vector.load %arg7[%c0_71, %c3, %c0_72, %c0_73] : memref<1x8x8x128xf32, #tpu.memory_space<vmem>>, vector<1x1x8x128xf32>
    %104 = vector.shape_cast %103 : vector<1x1x8x128xf32> to vector<8x128xf32>
    %105 = arith.mulf %89, %89 : vector<32x128xf32>
    %106 = vector.shape_cast %105 : vector<32x128xf32> to vector<4x8x128xf32>
    %cst_74 = arith.constant dense<0.000000e+00> : vector<8x128xf32>
    %107 = vector.multi_reduction <add>, %106, %cst_74 [0] : vector<4x8x128xf32> to vector<8x128xf32>
    %108 = arith.addf %104, %107 : vector<8x128xf32>
    %c0_75 = arith.constant 0 : index
    %c3_76 = arith.constant 3 : index
    %c0_77 = arith.constant 0 : index
    %c0_78 = arith.constant 0 : index
    %109 = vector.load %arg7[%c0_75, %c3_76, %c0_77, %c0_78] : memref<1x8x8x128xf32, #tpu.memory_space<vmem>>, vector<1x1x8x128xf32>
    %110 = vector.shape_cast %109 : vector<1x1x8x128xf32> to vector<8x128xf32>
    %111 = vector.shape_cast %108 : vector<8x128xf32> to vector<1x1x8x128xf32>
    tpu.vector_store %arg7[%c0_75, %c3_76, %c0_77, %c0_78], %111 {strides = array<i32>} : memref<1x8x8x128xf32, #tpu.memory_space<vmem>>, vector<1x1x8x128xf32>,
    %c0_79 = arith.constant 0 : index
    %c4 = arith.constant 4 : index
    %c0_80 = arith.constant 0 : index
    %c0_81 = arith.constant 0 : index
    %112 = vector.load %arg7[%c0_79, %c4, %c0_80, %c0_81] : memref<1x8x8x128xf32, #tpu.memory_space<vmem>>, vector<1x1x8x128xf32>
    %113 = vector.shape_cast %112 : vector<1x1x8x128xf32> to vector<8x128xf32>
    %114 = vector.shape_cast %93 : vector<32x128xf32> to vector<4x8x128xf32>
    %cst_82 = arith.constant dense<0.000000e+00> : vector<8x128xf32>
    %115 = vector.multi_reduction <add>, %114, %cst_82 [0] : vector<4x8x128xf32> to vector<8x128xf32>
    %116 = arith.addf %113, %115 : vector<8x128xf32>
    %c0_83 = arith.constant 0 : index
    %c4_84 = arith.constant 4 : index
    %c0_85 = arith.constant 0 : index
    %c0_86 = arith.constant 0 : index
    %117 = vector.load %arg7[%c0_83, %c4_84, %c0_85, %c0_86] : memref<1x8x8x128xf32, #tpu.memory_space<vmem>>, vector<1x1x8x128xf32>
    %118 = vector.shape_cast %117 : vector<1x1x8x128xf32> to vector<8x128xf32>
    %119 = vector.shape_cast %116 : vector<8x128xf32> to vector<1x1x8x128xf32>
    tpu.vector_store %arg7[%c0_83, %c4_84, %c0_85, %c0_86], %119 {strides = array<i32>} : memref<1x8x8x128xf32, #tpu.memory_space<vmem>>, vector<1x1x8x128xf32>,
    %120 = arith.mulf %58, %69 : vector<32x128xf32>
    %c1_i32_87 = arith.constant 1 : i32
    %121 = vector.broadcast %c1_i32_87 : i32 to vector<32x128xi32>
    %122 = arith.cmpi eq, %5, %121 : vector<32x128xi32>
    %123 = arith.extui %122 : vector<32x128xi1> to vector<32x128xi32>
    %124 = arith.sitofp %123 : vector<32x128xi32> to vector<32x128xf32>
    %c0_88 = arith.constant 0 : index
    %c5 = arith.constant 5 : index
    %c0_89 = arith.constant 0 : index
    %c0_90 = arith.constant 0 : index
    %125 = vector.load %arg7[%c0_88, %c5, %c0_89, %c0_90] : memref<1x8x8x128xf32, #tpu.memory_space<vmem>>, vector<1x1x8x128xf32>
    %126 = vector.shape_cast %125 : vector<1x1x8x128xf32> to vector<8x128xf32>
    %127 = arith.mulf %120, %124 : vector<32x128xf32>
    %128 = vector.shape_cast %127 : vector<32x128xf32> to vector<4x8x128xf32>
    %cst_91 = arith.constant dense<0.000000e+00> : vector<8x128xf32>
    %129 = vector.multi_reduction <add>, %128, %cst_91 [0] : vector<4x8x128xf32> to vector<8x128xf32>
    %130 = arith.addf %126, %129 : vector<8x128xf32>
    %c0_92 = arith.constant 0 : index
    %c5_93 = arith.constant 5 : index
    %c0_94 = arith.constant 0 : index
    %c0_95 = arith.constant 0 : index
    %131 = vector.load %arg7[%c0_92, %c5_93, %c0_94, %c0_95] : memref<1x8x8x128xf32, #tpu.memory_space<vmem>>, vector<1x1x8x128xf32>
    %132 = vector.shape_cast %131 : vector<1x1x8x128xf32> to vector<8x128xf32>
    %133 = vector.shape_cast %130 : vector<8x128xf32> to vector<1x1x8x128xf32>
    tpu.vector_store %arg7[%c0_92, %c5_93, %c0_94, %c0_95], %133 {strides = array<i32>} : memref<1x8x8x128xf32, #tpu.memory_space<vmem>>, vector<1x1x8x128xf32>,
    %c0_96 = arith.constant 0 : index
    %c6 = arith.constant 6 : index
    %c0_97 = arith.constant 0 : index
    %c0_98 = arith.constant 0 : index
    %134 = vector.load %arg7[%c0_96, %c6, %c0_97, %c0_98] : memref<1x8x8x128xf32, #tpu.memory_space<vmem>>, vector<1x1x8x128xf32>
    %135 = vector.shape_cast %134 : vector<1x1x8x128xf32> to vector<8x128xf32>
    %136 = arith.mulf %120, %120 : vector<32x128xf32>
    %137 = vector.shape_cast %136 : vector<32x128xf32> to vector<4x8x128xf32>
    %cst_99 = arith.constant dense<0.000000e+00> : vector<8x128xf32>
    %138 = vector.multi_reduction <add>, %137, %cst_99 [0] : vector<4x8x128xf32> to vector<8x128xf32>
    %139 = arith.addf %135, %138 : vector<8x128xf32>
    %c0_100 = arith.constant 0 : index
    %c6_101 = arith.constant 6 : index
    %c0_102 = arith.constant 0 : index
    %c0_103 = arith.constant 0 : index
    %140 = vector.load %arg7[%c0_100, %c6_101, %c0_102, %c0_103] : memref<1x8x8x128xf32, #tpu.memory_space<vmem>>, vector<1x1x8x128xf32>
    %141 = vector.shape_cast %140 : vector<1x1x8x128xf32> to vector<8x128xf32>
    %142 = vector.shape_cast %139 : vector<8x128xf32> to vector<1x1x8x128xf32>
    tpu.vector_store %arg7[%c0_100, %c6_101, %c0_102, %c0_103], %142 {strides = array<i32>} : memref<1x8x8x128xf32, #tpu.memory_space<vmem>>, vector<1x1x8x128xf32>,
    %c0_104 = arith.constant 0 : index
    %c7 = arith.constant 7 : index
    %c0_105 = arith.constant 0 : index
    %c0_106 = arith.constant 0 : index
    %143 = vector.load %arg7[%c0_104, %c7, %c0_105, %c0_106] : memref<1x8x8x128xf32, #tpu.memory_space<vmem>>, vector<1x1x8x128xf32>
    %144 = vector.shape_cast %143 : vector<1x1x8x128xf32> to vector<8x128xf32>
    %145 = vector.shape_cast %124 : vector<32x128xf32> to vector<4x8x128xf32>
    %cst_107 = arith.constant dense<0.000000e+00> : vector<8x128xf32>
    %146 = vector.multi_reduction <add>, %145, %cst_107 [0] : vector<4x8x128xf32> to vector<8x128xf32>
    %147 = arith.addf %144, %146 : vector<8x128xf32>
    %c0_108 = arith.constant 0 : index
    %c7_109 = arith.constant 7 : index
    %c0_110 = arith.constant 0 : index
    %c0_111 = arith.constant 0 : index
    %148 = vector.load %arg7[%c0_108, %c7_109, %c0_110, %c0_111] : memref<1x8x8x128xf32, #tpu.memory_space<vmem>>, vector<1x1x8x128xf32>
    %149 = vector.shape_cast %148 : vector<1x1x8x128xf32> to vector<8x128xf32>
    %150 = vector.shape_cast %147 : vector<8x128xf32> to vector<1x1x8x128xf32>
    tpu.vector_store %arg7[%c0_108, %c7_109, %c0_110, %c0_111], %150 {strides = array<i32>} : memref<1x8x8x128xf32, #tpu.memory_space<vmem>>, vector<1x1x8x128xf32>,
    return
  }
  func.func @transform_0(%arg0: i32, %arg1: i32, %arg2: i32) -> (i32, i32) {
    %c0_i32 = arith.constant 0 : i32
    %c0_i32_0 = arith.constant 0 : i32
    %c0_i32_1 = arith.constant 0 : i32
    return %c0_i32, %c0_i32_0 : i32, i32
  }
  func.func @transform_1(%arg0: i32, %arg1: i32, %arg2: i32) -> i32 {
    %c0_i32 = arith.constant 0 : i32
    %c0_i32_0 = arith.constant 0 : i32
    return %c0_i32 : i32
  }
  func.func @transform_2(%arg0: i32, %arg1: i32, %arg2: i32) -> (i32, i32, i32, i32) {
    %c1_i32 = arith.constant 1 : i32
    %0 = arith.muli %arg1, %c1_i32 : i32
    %1 = arith.addi %0, %arg2 : i32
    %c0_i32 = arith.constant 0 : i32
    %c0_i32_0 = arith.constant 0 : i32
    %c0_i32_1 = arith.constant 0 : i32
    return %arg0, %c0_i32, %1, %c0_i32_0 : i32, i32, i32, i32
  }
  func.func @transform_3(%arg0: i32, %arg1: i32, %arg2: i32) -> (i32, i32, i32) {
    %c1_i32 = arith.constant 1 : i32
    %0 = arith.muli %arg1, %c1_i32 : i32
    %1 = arith.addi %0, %arg2 : i32
    %c0_i32 = arith.constant 0 : i32
    %c0_i32_0 = arith.constant 0 : i32
    return %arg0, %1, %c0_i32 : i32, i32, i32
  }
  func.func @transform_4(%arg0: i32, %arg1: i32, %arg2: i32) -> (i32, i32, i32, i32) {
    %c1_i32 = arith.constant 1 : i32
    %0 = arith.muli %arg0, %c1_i32 : i32
    %1 = arith.addi %0, %arg1 : i32
    %c0_i32 = arith.constant 0 : i32
    %c0_i32_0 = arith.constant 0 : i32
    %c0_i32_1 = arith.constant 0 : i32
    %c0_i32_2 = arith.constant 0 : i32
    return %1, %c0_i32, %c0_i32_0, %c0_i32_1 : i32, i32, i32, i32
  }
}

</mosaic_0001>

<llo_original>
// kernel: loss_forward.1
$region0: #{loss_forward.1}
  #allocation0 [shape = 'u32[]', space=smem, size = 0x4, offset = 0x4, fixed_abs, tag = 'smem constant byte address 0x4 - core index']
  #allocation1 [shape = 'u32[144,128]{1,0:T(1,128)}', space=vmem, size = 0x12000, scoped, tag = 'internal scratch']
  %s0 = inlined_call_operand.vmem [shape: f32[3,2], index: 0, kind: input, shape index: {}]
  %s1 = inlined_call_operand.vmem [shape: f32[2], index: 1, kind: input, shape index: {}]
  %s2 = inlined_call_operand.vmem [shape: f32[2,3,32,128], index: 2, kind: input, shape index: {}]
  %s3 = inlined_call_operand.vmem [shape: s8[2,32,128], index: 3, kind: input, shape index: {}]
  %s4 = inlined_call_operand.vmem [shape: f32[2,8,8,128], index: 4, kind: output, shape index: {}]
  %s5 = sld [smem:[#allocation0]]
  $region61: #{loss_forward.1} parent=0
    _
  %s7 = ssub.s32 1, %s5
  %s8 = scalar_select 0, %s7, %s5
  $region1: #{loss_forward.1} parent=0
    #allocation2 [shape = 'u8[2048]{0}', space=smem, size = 0x800, scoped, tag = 'input window, operand 0, single buffered']
    #allocation3 [shape = 's32[2]{0}', space=sflag, size = 0x8, scoped, tag = 'scoped memory for loss_forward.1']
    #allocation4 [shape = 'u8[512]{0}', space=smem, size = 0x200, scoped, tag = 'input window, operand 1, single buffered']
    #allocation5 [shape = 's32[1]{0}', space=sflag, size = 0x4, scoped, tag = 'scoped memory for loss_forward.1']
    %9 = vsyncpa [#allocation3], 0
    %10 = vsyncpa [#allocation5], 0
    loop: start=0, step=1, limit=4
    $region2: #{loss_forward.1} parent=1 // loop_pre_header
      _
    $region3: #{loss_forward.1} parent=1 // loop_header
      %s12 = sphi 0, %s16
      %p13 = scmp.ge.s32.totalorder %s12, 4
      %s19 = sphi 0, %s38
      %s20 = sphi 0, %s34
      %s21 = sphi 0, %s30
      %s22 = sphi 0, %s19
      %s23 = sphi 0, %s20
      %s24 = sphi 0, %s21
      %s25 = sphi 0, %s22
      %s26 = sphi 0, %s23
      %s27 = sphi 0, %s24
      %s39 = sphi 0, %s39
      %s41 = sphi 0, %s39
      %s42 = sphi 0, %s41
      %s56 = sphi 0, %s42
      %s60 = sphi 0, %s60
      %s62 = sphi 0, %s60
      %s63 = sphi 0, %s62
      %s77 = sphi 0, %s63
      %s87 = sphi 0, %s89
      %s90 = sphi 0, %s87
      %s91 = sphi 0, %s90
      %s107 = sphi 0, %s91
      %s117 = sphi 0, %s119
      %s120 = sphi 0, %s117
      %s121 = sphi 0, %s120
      %s137 = sphi 0, %s121
      %s145 = sphi 0, %s147
      %s148 = sphi 0, %s145
      %s149 = sphi 0, %s148
      %s165 = sphi 0, %s149
    $region4: #{loss_forward.1} parent=1 // loop_header_branch
      %15 = sbr.rel (%p13) target = $region8
    $region5: #{loss_forward.1} parent=1 // loop_body
      %s17 = ssub.s32 %s12, 1
      %s18 = ssub.s32 %s12, 2
      %s28 = sadd.s32 1, %s21
      %p29 = scmp.ge.s32.totalorder %s28, 1
      %s30 = scalar_select %p29, 0, %s28
      %s31 = sadd.s32 1, %s20
      %s32 = scalar_select %p29, %s31, %s20
      %p33 = scmp.ge.s32.totalorder %s32, 1
      %s34 = scalar_select %p33, 0, %s32
      %s35 = sadd.s32 1, %s19
      %s36 = scalar_select %p33, %s35, %s19
      %p37 = scmp.ge.s32.totalorder %s36, 2
      %s38 = scalar_select %p37, 0, %s36
      %s40 = sadd.s32 %s39, 1
      %p43 = scmp.eq.s32.totalorder %s12, 1
      %p44 = scmp.ne.s32.totalorder %s39, %s41
      %p45 = scmp.eq.s32.totalorder %s12, 0
      %p46 = por %p44, %p45
      %p47 = scmp.ne.s32.totalorder %s39, %s41
      %p48 = scmp.eq.s32.totalorder %s17, 1
      %p49 = por %p47, %p48
      %p50 = scmp.ne.s32.totalorder %s41, %s42
      %p51 = scmp.eq.s32.totalorder %s17, 0
      %p52 = por %p50, %p51
      %p53 = scmp.ne.s32.totalorder %s41, %s42
      %p54 = scmp.eq.s32.totalorder %s18, 1
      %p55 = por %p53, %p54
      %p57 = scmp.ne.s32.totalorder %s42, %s56
      %p58 = scmp.eq.s32.totalorder %s18, 0
      %p59 = por %p57, %p58
      %s61 = sadd.s32 %s60, 1
      %p64 = scmp.eq.s32.totalorder %s12, 1
      %p65 = scmp.ne.s32.totalorder %s60, %s62
      %p66 = scmp.eq.s32.totalorder %s12, 0
      %p67 = por %p65, %p66
      %p68 = scmp.ne.s32.totalorder %s60, %s62
      %p69 = scmp.eq.s32.totalorder %s17, 1
      %p70 = por %p68, %p69
      %p71 = scmp.ne.s32.totalorder %s62, %s63
      %p72 = scmp.eq.s32.totalorder %s17, 0
      %p73 = por %p71, %p72
      %p74 = scmp.ne.s32.totalorder %s62, %s63
      %p75 = scmp.eq.s32.totalorder %s18, 1
      %p76 = por %p74, %p75
      %p78 = scmp.ne.s32.totalorder %s63, %s77
      %p79 = scmp.eq.s32.totalorder %s18, 0
      %p80 = por %p78, %p79
      %s81 = sadd.s32 %s20, %s21
      %s82 = sadd.s32 %s34, %s30
      %s83 = ssub.s32 %s19, %s38
      %s84 = ssub.s32 %s81, %s82
      %s85 = sor.u32 %s83, %s84
      %p86 = scmp.eq.s32.totalorder %s85, 0
      %s88 = sadd.s32 %s87, 1
      %s89 = scalar_select %p86, %s87, %s88
      %p92 = pneg %p86
      %p93 = scmp.eq.s32.totalorder %s12, 1
      %p94 = por %p92, %p93
      %p95 = scmp.ne.s32.totalorder %s87, %s90
      %p96 = scmp.eq.s32.totalorder %s12, 0
      %p97 = por %p95, %p96
      %p98 = scmp.ne.s32.totalorder %s87, %s90
      %p99 = scmp.eq.s32.totalorder %s17, 1
      %p100 = por %p98, %p99
      %p101 = scmp.ne.s32.totalorder %s90, %s91
      %p102 = scmp.eq.s32.totalorder %s17, 0
      %p103 = por %p101, %p102
      %p104 = scmp.ne.s32.totalorder %s90, %s91
      %p105 = scmp.eq.s32.totalorder %s18, 1
      %p106 = por %p104, %p105
      %p108 = scmp.ne.s32.totalorder %s91, %s107
      %p109 = scmp.eq.s32.totalorder %s18, 0
      %p110 = por %p108, %p109
      %s111 = sadd.s32 %s20, %s21
      %s112 = sadd.s32 %s34, %s30
      %s113 = ssub.s32 %s19, %s38
      %s114 = ssub.s32 %s111, %s112
      %s115 = sor.u32 %s113, %s114
      %p116 = scmp.eq.s32.totalorder %s115, 0
      %s118 = sadd.s32 %s117, 1
      %s119 = scalar_select %p116, %s117, %s118
      %p122 = pneg %p116
      %p123 = scmp.eq.s32.totalorder %s12, 1
      %p124 = por %p122, %p123
      %p125 = scmp.ne.s32.totalorder %s117, %s120
      %p126 = scmp.eq.s32.totalorder %s12, 0
      %p127 = por %p125, %p126
      %p128 = scmp.ne.s32.totalorder %s117, %s120
      %p129 = scmp.eq.s32.totalorder %s17, 1
      %p130 = por %p128, %p129
      %p131 = scmp.ne.s32.totalorder %s120, %s121
      %p132 = scmp.eq.s32.totalorder %s17, 0
      %p133 = por %p131, %p132
      %p134 = scmp.ne.s32.totalorder %s120, %s121
      %p135 = scmp.eq.s32.totalorder %s18, 1
      %p136 = por %p134, %p135
      %p138 = scmp.ne.s32.totalorder %s121, %s137
      %p139 = scmp.eq.s32.totalorder %s18, 0
      %p140 = por %p138, %p139
      %s141 = sadd.s32 %s19, %s20
      %s142 = sadd.s32 %s38, %s34
      %s143 = ssub.s32 %s141, %s142
      %p144 = scmp.eq.s32.totalorder %s143, 0
      %s146 = sadd.s32 %s145, 1
      %s147 = scalar_select %p144, %s145, %s146
      %p150 = pneg %p144
      %p151 = scmp.eq.s32.totalorder %s12, 1
      %p152 = por %p150, %p151
      %p153 = scmp.ne.s32.totalorder %s145, %s148
      %p154 = scmp.eq.s32.totalorder %s12, 0
      %p155 = por %p153, %p154
      %p156 = scmp.ne.s32.totalorder %s145, %s148
      %p157 = scmp.eq.s32.totalorder %s17, 1
      %p158 = por %p156, %p157
      %p159 = scmp.ne.s32.totalorder %s148, %s149
      %p160 = scmp.eq.s32.totalorder %s17, 0
      %p161 = por %p159, %p160
      %p162 = scmp.ne.s32.totalorder %s148, %s149
      %p163 = scmp.eq.s32.totalorder %s18, 1
      %p164 = por %p162, %p163
      %p166 = scmp.ne.s32.totalorder %s149, %s165
      %p167 = scmp.eq.s32.totalorder %s18, 0
      %p168 = por %p166, %p167
      %p169 = scmp.le.s32.totalorder 1, %s12
      %p170 = scmp.lt.s32.totalorder %s12, 3
      %p171 = pnand %p169, %p170
      %p172 = pneg %p171
      // Predicated region
      $region9: #{loss_forward.1} parent=5 // pred_check
        _
      $region10: #{loss_forward.1} parent=5 // pred_check_branch
        %174 = sbr.rel (%p171) target = $region12
      $region11: #{loss_forward.1} parent=5 // pred_region
        %s175 = ssub.s32 %s12, 1
        // Predicated region
        $region13: #{loss_forward.1} parent=11 // pred_check
          %p176 = pneg %p52
        $region14: #{loss_forward.1} parent=11 // pred_check_branch
          %178 = sbr.rel (%p176) target = $region16
        $region15: #{loss_forward.1} parent=11 // pred_region
          %s180 = ssub.s32 64, 64
          %181 = vsyncadd [#allocation3], %s180
          %s183 = sshll.u32 %s0, 4
          %s184 = int_to_ptr.vmem [resolvable:$true] %s183
          %186 = dma.vmem_to_smem %s184, 64, [#allocation2], [#allocation3]
        $region16: #{loss_forward.1} parent=11 // pred_fallthru
          _
        // Predicated region
        $region17: #{loss_forward.1} parent=11 // pred_check
          %p187 = pneg %p73
        $region18: #{loss_forward.1} parent=11 // pred_check_branch
          %189 = sbr.rel (%p187) target = $region20
        $region19: #{loss_forward.1} parent=11 // pred_region
          %s191 = ssub.s32 16, 16
          %192 = vsyncadd [#allocation5], %s191
          %s194 = sshll.u32 %s1, 4
          %s195 = int_to_ptr.vmem [resolvable:$true] %s194
          %197 = dma.vmem_to_smem %s195, 16, [#allocation4], [#allocation5]
        $region20: #{loss_forward.1} parent=11 // pred_fallthru
          _
      $region12: #{loss_forward.1} parent=5 // pred_fallthru
        _
      %p198 = scmp.lt.s32.totalorder %s12, 2
      // Predicated region
      $region21: #{loss_forward.1} parent=5 // pred_check
        %p199 = pneg %p198
      $region22: #{loss_forward.1} parent=5 // pred_check_branch
        %201 = sbr.rel (%p199) target = $region24
      $region23: #{loss_forward.1} parent=5 // pred_region
        // Predicated region
        $region25: #{loss_forward.1} parent=23 // pred_check
          %p202 = pneg %p97
        $region26: #{loss_forward.1} parent=23 // pred_check_branch
          %204 = sbr.rel (%p202) target = $region28
        $region27: #{loss_forward.1} parent=23 // pred_region
          %s205 = sadd.s32 %s20, %s21
          %s206 = smul.u32 4, %s205
          %p207 = scmp.lt.s32.totalorder %s19, 1
          %s208 = scalar_select %p207, %s19, 1
          %p209 = scmp.lt.s32.totalorder %s206, 3
          %s210 = scalar_select %p209, %s206, 3
          %s211 = smul.addr %s208, 12
          %s212 = sadd.s32 %s210, %s211
          %s213 = smul.addr %s212, 8
          %s214 = scalar_lea.vmem %s2, %s213
          %s215 = sadd.s32 %s20, %s21
          %s216 = smul.u32 4, %s215
        $region28: #{loss_forward.1} parent=23 // pred_fallthru
          _
        // Predicated region
        $region29: #{loss_forward.1} parent=23 // pred_check
          %p217 = pneg %p127
        $region30: #{loss_forward.1} parent=23 // pred_check_branch
          %219 = sbr.rel (%p217) target = $region32
        $region31: #{loss_forward.1} parent=23 // pred_region
          %s220 = sadd.s32 %s20, %s21
          %p221 = scmp.lt.s32.totalorder %s19, 1
          %s222 = scalar_select %p221, %s19, 1
          %p223 = scmp.lt.s32.totalorder %s220, 0
          %s224 = scalar_select %p223, %s220, 0
          %s225 = sadd.s32 %s224, %s222
          %s226 = smul.addr %s225, 8
          %s227 = scalar_lea.vmem %s3, %s226
          %s228 = sadd.s32 %s20, %s21
        $region32: #{loss_forward.1} parent=23 // pred_fallthru
          _
      $region24: #{loss_forward.1} parent=5 // pred_fallthru
        _
      %p229 = scmp.le.s32.totalorder 1, %s12
      %p230 = scmp.lt.s32.totalorder %s12, 3
      %p231 = pnand %p229, %p230
      %p232 = pneg %p231
      // Predicated region
      $region33: #{loss_forward.1} parent=5 // pred_check
        _
      $region34: #{loss_forward.1} parent=5 // pred_check_branch
        %234 = sbr.rel (%p231) target = $region36
      $region35: #{loss_forward.1} parent=5 // pred_region
        %s235 = ssub.s32 %s12, 1
        // Predicated region
        $region37: #{loss_forward.1} parent=35 // pred_check
          %p236 = pneg %p52
        $region38: #{loss_forward.1} parent=35 // pred_check_branch
          %238 = sbr.rel (%p236) target = $region40
        $region39: #{loss_forward.1} parent=35 // pred_region
          %239 = dma.done [#allocation3], 64
        $region40: #{loss_forward.1} parent=35 // pred_fallthru
          _
        // Predicated region
        $region41: #{loss_forward.1} parent=35 // pred_check
          %p240 = pneg %p73
        $region42: #{loss_forward.1} parent=35 // pred_check_branch
          %242 = sbr.rel (%p240) target = $region44
        $region43: #{loss_forward.1} parent=35 // pred_region
          %243 = dma.done [#allocation5], 16
        $region44: #{loss_forward.1} parent=35 // pred_fallthru
          _
        %244 = sfence
        %p245 = pneg %p52
        %p246 = pneg %p49
        %p247 = pneg %p73
        %p248 = pneg %p70
        %s249 = sadd.s32 %s23, %s24
        %s250 = smul.u32 4, %s249
        %p251 = scmp.lt.s32.totalorder %s22, 1
        %s252 = scalar_select %p251, %s22, 1
        %p253 = scmp.lt.s32.totalorder %s250, 3
        %s254 = scalar_select %p253, %s250, 3
        %s255 = smul.addr %s252, 12
        %s256 = sadd.s32 %s254, %s255
        %s257 = smul.addr %s256, 8
        %s258 = scalar_lea.vmem %s2, %s257
        %p259 = pneg %p103
        %p260 = pneg %p100
        %s261 = sadd.s32 %s23, %s24
        %p262 = scmp.lt.s32.totalorder %s22, 1
        %s263 = scalar_select %p262, %s22, 1
        %p264 = scmp.lt.s32.totalorder %s261, 0
        %s265 = scalar_select %p264, %s261, 0
        %s266 = sadd.s32 %s265, %s263
        %s267 = smul.addr %s266, 8
        %s268 = scalar_lea.vmem %s3, %s267
        %p269 = pneg %p133
        %p270 = pneg %p130
        %p271 = pneg %p161
        %p272 = pneg %p158
        %s273 = sadd.s32 %s22, %s23
        %p274 = scmp.lt.s32.totalorder %s273, 1
        %s275 = scalar_select %p274, %s273, 1
        %s276 = smul.addr %s275, 8
        %s277 = smul.addr %s276, 8
        %s278 = scalar_lea.vmem %s4, %s277
        %s279 = sadd.s32 %s23, %s24
        %s280 = smul.u32 4, %s279
        %p281 = scmp.lt.s32.totalorder %s22, 1
        %s282 = scalar_select %p281, %s22, 1
        %p283 = scmp.lt.s32.totalorder %s280, 3
        %s284 = scalar_select %p283, %s280, 3
        %s285 = smul.addr %s282, 12
        %s286 = sadd.s32 %s284, %s285
        %s287 = smul.addr %s286, 8
        %s288 = scalar_lea.vmem %s2, %s287
        %s289 = sadd.s32 %s23, %s24
        %s290 = smul.u32 4, %s289
        %s291 = sadd.s32 %s23, %s24
        %p292 = scmp.lt.s32.totalorder %s22, 1
        %s293 = scalar_select %p292, %s22, 1
        %p294 = scmp.lt.s32.totalorder %s291, 0
        %s295 = scalar_select %p294, %s291, 0
        %s296 = sadd.s32 %s295, %s293
        %s297 = smul.addr %s296, 8
        %s298 = scalar_lea.vmem %s3, %s297
        %s299 = sadd.s32 %s23, %s24
        %s300 = sadd.s32 %s22, %s23
        %p301 = scmp.lt.s32.totalorder %s300, 1
        %s302 = scalar_select %p301, %s300, 1
        %s303 = smul.addr %s302, 8
        %s304 = smul.addr %s303, 8
        %s305 = scalar_lea.vmem %s4, %s304
        %s306 = sadd.s32 %s22, %s23
        %p307 = scmp.eq.s32.totalorder %s24, 0
        // Predicated region
        $region45: #{loss_forward.1} parent=35 // pred_check
          %p308 = pneg %p307
        $region46: #{loss_forward.1} parent=35 // pred_check_branch
          %310 = sbr.rel (%p308) target = $region48
        $region47: #{loss_forward.1} parent=35 // pred_region
          %311 = vst [vmem:[%s305] sm:$0xff] 0.0
          %312 = vst [vmem:[%s305 + $0x8] sm:$0xff] 0.0
          %313 = vst [vmem:[%s305 + $0x10] sm:$0xff] 0.0
          %314 = vst [vmem:[%s305 + $0x18] sm:$0xff] 0.0
          %315 = vst [vmem:[%s305 + $0x20] sm:$0xff] 0.0
          %316 = vst [vmem:[%s305 + $0x28] sm:$0xff] 0.0
          %317 = vst [vmem:[%s305 + $0x30] sm:$0xff] 0.0
          %318 = vst [vmem:[%s305 + $0x38] sm:$0xff] 0.0
        $region48: #{loss_forward.1} parent=35 // pred_fallthru
          _
        %v319 = vld [vmem:[%s298] sm:$0xff]
        %v320 = vunpack.c.0.s8 %v319
        %v321 = vunpack.c.1.s8 %v319
        %v322 = vunpack.c.2.s8 %v319
        %v323 = vunpack.c.3.s8 %v319
        %vm324 = vcmp.ge.s32.totalorder %v320, 0
        %vm325 = vcmp.ge.s32.totalorder %v321, 0
        %vm326 = vcmp.ge.s32.totalorder %v322, 0
        %vm327 = vcmp.ge.s32.totalorder %v323, 0
        %v328 = vsel %vm324, 1, 0
        %v329 = vsel %vm325, 1, 0
        %v330 = vsel %vm326, 1, 0
        %v331 = vsel %vm327, 1, 0
        %v332 = vcvt.s32.f32 %v328
        %v333 = vcvt.s32.f32 %v329
        %v334 = vcvt.s32.f32 %v330
        %v335 = vcvt.s32.f32 %v331
        %v336 = vld [vmem:[%s288] sm:$0xff]
        %v337 = vld [vmem:[%s288 + $0x8] sm:$0xff]
        %v338 = vld [vmem:[%s288 + $0x10] sm:$0xff]
        %v339 = vld [vmem:[%s288 + $0x18] sm:$0xff]
        %s340 = sld [smem:[#allocation2]]
        %v341 = vstv %s340
        %v342 = vmul.f32 %v336, %v341
        %v343 = vmul.f32 %v337, %v341
        %v344 = vmul.f32 %v338, %v341
        %v345 = vmul.f32 %v339, %v341
        %s346 = scalar_lea.vmem %s288, 32
        %v347 = vld [vmem:[%s346] sm:$0xff]
        %v348 = vld [vmem:[%s346 + $0x8] sm:$0xff]
        %v349 = vld [vmem:[%s346 + $0x10] sm:$0xff]
        %v350 = vld [vmem:[%s346 + $0x18] sm:$0xff]
        %s351 = sld [smem:[#allocation2 + $0x80]]
        %v352 = vstv %s351
        %v353 = vmul.f32 %v347, %v352
        %v354 = vmul.f32 %v348, %v352
        %v355 = vmul.f32 %v349, %v352
        %v356 = vmul.f32 %v350, %v352
        %v357 = vadd.f32 %v342, %v353
        %v358 = vadd.f32 %v343, %v354
        %v359 = vadd.f32 %v344, %v355
        %v360 = vadd.f32 %v345, %v356
        %s361 = scalar_lea.vmem %s288, 64
        %v362 = vld [vmem:[%s361] sm:$0xff]
        %v363 = vld [vmem:[%s361 + $0x8] sm:$0xff]
        %v364 = vld [vmem:[%s361 + $0x10] sm:$0xff]
        %v365 = vld [vmem:[%s361 + $0x18] sm:$0xff]
        %s366 = sld [smem:[#allocation2 + $0x100]]
        %v367 = vstv %s366
        %v368 = vmul.f32 %v362, %v367
        %v369 = vmul.f32 %v363, %v367
        %v370 = vmul.f32 %v364, %v367
        %v371 = vmul.f32 %v365, %v367
        %v372 = vadd.f32 %v357, %v368
        %v373 = vadd.f32 %v358, %v369
        %v374 = vadd.f32 %v359, %v370
        %v375 = vadd.f32 %v360, %v371
        %s376 = sld [smem:[#allocation4]]
        %v377 = vstv %s376
        %v378 = vadd.f32 %v372, %v377
        %v379 = vadd.f32 %v373, %v377
        %v380 = vadd.f32 %v374, %v377
        %v381 = vadd.f32 %v375, %v377
        %s382 = sld [smem:[#allocation2 + $0x1]]
        %v383 = vstv %s382
        %v384 = vmul.f32 %v336, %v383
        %v385 = vmul.f32 %v337, %v383
        %v386 = vmul.f32 %v338, %v383
        %v387 = vmul.f32 %v339, %v383
        %s388 = sld [smem:[#allocation2 + $0x81]]
        %v389 = vstv %s388
        %v390 = vmul.f32 %v347, %v389
        %v391 = vmul.f32 %v348, %v389
        %v392 = vmul.f32 %v349, %v389
        %v393 = vmul.f32 %v350, %v389
        %v394 = vadd.f32 %v384, %v390
        %v395 = vadd.f32 %v385, %v391
        %v396 = vadd.f32 %v386, %v392
        %v397 = vadd.f32 %v387, %v393
        %s398 = sld [smem:[#allocation2 + $0x101]]
        %v399 = vstv %s398
        %v400 = vmul.f32 %v362, %v399
        %v401 = vmul.f32 %v363, %v399
        %v402 = vmul.f32 %v364, %v399
        %v403 = vmul.f32 %v365, %v399
        %v404 = vadd.f32 %v394, %v400
        %v405 = vadd.f32 %v395, %v401
        %v406 = vadd.f32 %v396, %v402
        %v407 = vadd.f32 %v397, %v403
        %s408 = sld [smem:[#allocation4 + $0x1]]
        %v409 = vstv %s408
        %v410 = vadd.f32 %v404, %v409
        %v411 = vadd.f32 %v405, %v409
        %v412 = vadd.f32 %v406, %v409
        %v413 = vadd.f32 %v407, %v409
        %v414 = vmax.f32 %v378, %v410
        %v415 = vmax.f32 %v379, %v411
        %v416 = vmax.f32 %v380, %v412
        %v417 = vmax.f32 %v381, %v413
        %v418 = vsub.f32 %v378, %v414
        %v419 = vsub.f32 %v379, %v415
        %v420 = vsub.f32 %v380, %v416
        %v421 = vsub.f32 %v381, %v417
        %v422 = vmul.f32 %v418, 1.442695
        %v423 = vpow.pop %v422
        %v424 = vmul.f32 %v419, 1.442695
        %v425 = vpow.pop %v424
        %v426 = vmul.f32 %v420, 1.442695
        %v427 = vpow.pop %v426
        %v428 = vmul.f32 %v421, 1.442695
        %v429 = vpow.pop %v428
        %vm430 = vcmp.eq.s32.totalorder %v320, 0
        %vm431 = vcmp.eq.s32.totalorder %v321, 0
        %vm432 = vcmp.eq.s32.totalorder %v322, 0
        %vm433 = vcmp.eq.s32.totalorder %v323, 0
        %v434 = vsel %vm430, %v418, 0.0
        %v435 = vsel %vm431, %v419, 0.0
        %v436 = vsel %vm432, %v420, 0.0
        %v437 = vsel %vm433, %v421, 0.0
        %v438 = vsub.f32 %v410, %v414
        %v439 = vsub.f32 %v411, %v415
        %v440 = vsub.f32 %v412, %v416
        %v441 = vsub.f32 %v413, %v417
        %v442 = vmul.f32 %v438, 1.442695
        %v443 = vpow.pop %v442
        %v444 = vmul.f32 %v439, 1.442695
        %v445 = vpow.pop %v444
        %v446 = vmul.f32 %v440, 1.442695
        %v447 = vpow.pop %v446
        %v448 = vmul.f32 %v441, 1.442695
        %v449 = vpow.pop %v448
        %v450 = vadd.f32 %v423, %v443
        %v451 = vadd.f32 %v425, %v445
        %v452 = vadd.f32 %v427, %v447
        %v453 = vadd.f32 %v429, %v449
        %vm454 = vcmp.eq.s32.totalorder %v320, 1
        %vm455 = vcmp.eq.s32.totalorder %v321, 1
        %vm456 = vcmp.eq.s32.totalorder %v322, 1
        %vm457 = vcmp.eq.s32.totalorder %v323, 1
        %v458 = vsel %vm454, %v438, 0.0
        %v459 = vsel %vm455, %v439, 0.0
        %v460 = vsel %vm456, %v440, 0.0
        %v461 = vsel %vm457, %v441, 0.0
        %v462 = vadd.f32 %v434, %v458
        %v463 = vadd.f32 %v435, %v459
        %v464 = vadd.f32 %v436, %v460
        %v465 = vadd.f32 %v437, %v461
        %v466 = vrcp.pop %v450
        %v467 = vrcp.pop %v451
        %v468 = vrcp.pop %v452
        %v469 = vrcp.pop %v453
        %v470 = vmul.f32 %v450, %v466
        %v471 = vmul.f32 %v451, %v467
        %v472 = vmul.f32 %v452, %v468
        %v473 = vmul.f32 %v453, %v469
        %v474 = vsub.f32 2.0, %v470
        %v475 = vsub.f32 2.0, %v471
        %v476 = vsub.f32 2.0, %v472
        %v477 = vsub.f32 2.0, %v473
        %v478 = vmul.f32 %v466, %v474
        %v479 = vmul.f32 %v467, %v475
        %v480 = vmul.f32 %v468, %v476
        %v481 = vmul.f32 %v469, %v477
        %v482 = vlog2.pop %v450
        %v483 = vmul.f32 %v482, 0.6931472
        %v484 = vlog2.pop %v451
        %v485 = vmul.f32 %v484, 0.6931472
        %v486 = vlog2.pop %v452
        %v487 = vmul.f32 %v486, 0.6931472
        %v488 = vlog2.pop %v453
        %v489 = vmul.f32 %v488, 0.6931472
        %v490 = vsub.f32 %v483, %v462
        %v491 = vsub.f32 %v485, %v463
        %v492 = vsub.f32 %v487, %v464
        %v493 = vsub.f32 %v489, %v465
        %v494 = vmul.f32 %v490, %v332
        %v495 = vmul.f32 %v491, %v333
        %v496 = vmul.f32 %v492, %v334
        %v497 = vmul.f32 %v493, %v335
        %v498 = vld [vmem:[%s305] sm:$0xff]
        %v499 = vadd.f32 %v494, %v495
        %v500 = vadd.f32 %v499, %v496
        %v501 = vadd.f32 %v500, %v497
        %v502 = vadd.f32 %v498, %v501
        %503 = vst [vmem:[%s305] sm:$0xff] %v502
        %s504 = scalar_lea.vmem %s305, 8
        %v505 = vld [vmem:[%s504] sm:$0xff]
        %v506 = vadd.f32 %v332, %v333
        %v507 = vadd.f32 %v506, %v334
        %v508 = vadd.f32 %v507, %v335
        %v509 = vadd.f32 %v505, %v508
        %510 = vst [vmem:[%s504] sm:$0xff] %v509
        %v511 = vmul.f32 %v423, %v478
        %v512 = vmul.f32 %v425, %v479
        %v513 = vmul.f32 %v427, %v480
        %v514 = vmul.f32 %v429, %v481
        %v515 = vsel %vm430, 1, 0
        %v516 = vsel %vm431, 1, 0
        %v517 = vsel %vm432, 1, 0
        %v518 = vsel %vm433, 1, 0
        %v519 = vcvt.s32.f32 %v515
        %v520 = vcvt.s32.f32 %v516
        %v521 = vcvt.s32.f32 %v517
        %v522 = vcvt.s32.f32 %v518
        %s523 = scalar_lea.vmem %s305, 16
        %v524 = vld [vmem:[%s523] sm:$0xff]
        %v525 = vmul.f32 %v511, %v519
        %v526 = vmul.f32 %v512, %v520
        %v527 = vmul.f32 %v513, %v521
        %v528 = vmul.f32 %v514, %v522
        %v529 = vadd.f32 %v525, %v526
        %v530 = vadd.f32 %v529, %v527
        %v531 = vadd.f32 %v530, %v528
        %v532 = vadd.f32 %v524, %v531
        %533 = vst [vmem:[%s523] sm:$0xff] %v532
        %s534 = scalar_lea.vmem %s305, 24
        %v535 = vld [vmem:[%s534] sm:$0xff]
        %v536 = vmul.f32 %v511, %v511
        %v537 = vmul.f32 %v512, %v512
        %v538 = vmul.f32 %v513, %v513
        %v539 = vmul.f32 %v514, %v514
        %v540 = vadd.f32 %v536, %v537
        %v541 = vadd.f32 %v540, %v538
        %v542 = vadd.f32 %v541, %v539
        %v543 = vadd.f32 %v535, %v542
        %544 = vst [vmem:[%s534] sm:$0xff] %v543
        %s545 = scalar_lea.vmem %s305, 32
        %v546 = vld [vmem:[%s545] sm:$0xff]
        %v547 = vadd.f32 %v519, %v520
        %v548 = vadd.f32 %v547, %v521
        %v549 = vadd.f32 %v548, %v522
        %v550 = vadd.f32 %v546, %v549
        %551 = vst [vmem:[%s545] sm:$0xff] %v550
        %v552 = vmul.f32 %v443, %v478
        %v553 = vmul.f32 %v445, %v479
        %v554 = vmul.f32 %v447, %v480
        %v555 = vmul.f32 %v449, %v481
        %v556 = vsel %vm454, 1, 0
        %v557 = vsel %vm455, 1, 0
        %v558 = vsel %vm456, 1, 0
        %v559 = vsel %vm457, 1, 0
        %v560 = vcvt.s32.f32 %v556
        %v561 = vcvt.s32.f32 %v557
        %v562 = vcvt.s32.f32 %v558
        %v563 = vcvt.s32.f32 %v559
        %s564 = scalar_lea.vmem %s305, 40
        %v565 = vld [vmem:[%s564] sm:$0xff]
        %v566 = vmul.f32 %v552, %v560
        %v567 = vmul.f32 %v553, %v561
        %v568 = vmul.f32 %v554, %v562
        %v569 = vmul.f32 %v555, %v563
        %v570 = vadd.f32 %v566, %v567
        %v571 = vadd.f32 %v570, %v568
        %v572 = vadd.f32 %v571, %v569
        %v573 = vadd.f32 %v565, %v572
        %574 = vst [vmem:[%s564] sm:$0xff] %v573
        %s575 = scalar_lea.vmem %s305, 48
        %v576 = vld [vmem:[%s575] sm:$0xff]
        %v577 = vmul.f32 %v552, %v552
        %v578 = vmul.f32 %v553, %v553
        %v579 = vmul.f32 %v554, %v554
        %v580 = vmul.f32 %v555, %v555
        %v581 = vadd.f32 %v577, %v578
        %v582 = vadd.f32 %v581, %v579
        %v583 = vadd.f32 %v582, %v580
        %v584 = vadd.f32 %v576, %v583
        %585 = vst [vmem:[%s575] sm:$0xff] %v584
        %s586 = scalar_lea.vmem %s305, 56
        %v587 = vld [vmem:[%s586] sm:$0xff]
        %v588 = vadd.f32 %v560, %v561
        %v589 = vadd.f32 %v588, %v562
        %v590 = vadd.f32 %v589, %v563
        %v591 = vadd.f32 %v587, %v590
        %592 = vst [vmem:[%s586] sm:$0xff] %v591
        %s593 = sadd.s32 %s22, %s23
        %p594 = scmp.lt.s32.totalorder %s593, 1
        %s595 = scalar_select %p594, %s593, 1
        %s596 = smul.addr %s595, 8
        %s597 = smul.addr %s596, 8
        %s598 = scalar_lea.vmem %s4, %s597
        // Predicated region
        $region49: #{loss_forward.1} parent=35 // pred_check
          %p599 = pneg %p158
        $region50: #{loss_forward.1} parent=35 // pred_check_branch
          %601 = sbr.rel (%p599) target = $region52
        $region51: #{loss_forward.1} parent=35 // pred_region
          %s602 = sadd.s32 %s22, %s23
        $region52: #{loss_forward.1} parent=35 // pred_fallthru
          _
      $region36: #{loss_forward.1} parent=5 // pred_fallthru
        _
      %p603 = scmp.le.s32.totalorder 2, %s12
      // Predicated region
      $region53: #{loss_forward.1} parent=5 // pred_check
        %p604 = pneg %p603
      $region54: #{loss_forward.1} parent=5 // pred_check_branch
        %606 = sbr.rel (%p604) target = $region56
      $region55: #{loss_forward.1} parent=5 // pred_region
        %s607 = ssub.s32 %s12, 2
        // Predicated region
        $region57: #{loss_forward.1} parent=55 // pred_check
          %p608 = pneg %p164
        $region58: #{loss_forward.1} parent=55 // pred_check_branch
          %610 = sbr.rel (%p608) target = $region60
        $region59: #{loss_forward.1} parent=55 // pred_region
          %s611 = sadd.s32 %s25, %s26
          %p612 = scmp.lt.s32.totalorder %s611, 1
          %s613 = scalar_select %p612, %s611, 1
          %s614 = smul.addr %s613, 8
          %s615 = smul.addr %s614, 8
          %s616 = scalar_lea.vmem %s4, %s615
        $region60: #{loss_forward.1} parent=55 // pred_fallthru
          _
      $region56: #{loss_forward.1} parent=5 // pred_fallthru
        _
    $region6: #{loss_forward.1} parent=1 // loop_footer
      %s16 = sadd.s32 1, %s12
    $region7: #{loss_forward.1} parent=1 // loop_footer_branch
      %11 = sbr.rel target = $region3
    $region8: #{loss_forward.1} parent=1 // loop_exit
      _
    %617 = vsyncpa [#allocation3], 1
    %s618 = scalar_lea.sflag [#allocation3], 1
    %619 = vsyncpa %s618, 1
    %620 = vsyncpa [#allocation5], 1

</llo_original>
